<compile_context>
chip_gen: v6e
topology: v6e:2x2x1
jax: 0.10.0
libtpu: 0.0.40
codegen_flags: <defaults>
</compile_context>

<pallas_src>
import math
import functools

import jax
import jax.numpy as jnp
from jax import lax
from jax.experimental import pallas as pl
from jax.experimental.pallas import tpu as pltpu


def _gelu_exact_f32(x):
    # PyTorch F.gelu (approximate='none'): 0.5*x*(1+erf(x/sqrt(2))), in f32.
    return 0.5 * x * (1.0 + lax.erf(x * jnp.float32(1.0 / math.sqrt(2.0))))


def gpt2_mlp_kernel(x_ref, wfc_ref, bfc_ref, wproj_ref, bproj_ref,
                    o_ref, acc_ref):
    # x_ref:     (TM, E)        wfc_ref:   (TH, E)    bfc_ref:   (1, TH)
    # wproj_ref: (E, TH)        bproj_ref: (1, E)
    # o_ref:     (TM, E)        acc_ref:   (TM, E) f32 scratch
    k = pl.program_id(1)

    @pl.when(k == 0)
    def _init():
        # Fold b_proj into the accumulator init (saves one (TM,E) add per step).
        acc_ref[...] = jnp.broadcast_to(
            bproj_ref[...].astype(jnp.float32), acc_ref.shape)

    # h = x @ W_fc^T  -> contract last dims, no transpose copy needed.
    h = lax.dot_general(
        x_ref[...], wfc_ref[...],
        dimension_numbers=(((1,), (1,)), ((), ())),
        preferred_element_type=jnp.float32)
    h = h + bfc_ref[...].astype(jnp.float32)
    h = _gelu_exact_f32(h)

    # y_partial = h @ W_proj^T (this H-slice), accumulate in f32.
    acc_ref[...] += lax.dot_general(
        h.astype(wproj_ref.dtype), wproj_ref[...],
        dimension_numbers=(((1,), (1,)), ((), ())),
        preferred_element_type=jnp.float32)

    @pl.when(k == pl.num_programs(1) - 1)
    def _store():
        o_ref[...] = acc_ref[...].astype(o_ref.dtype)


def _choose_tile(dim, preferred, multiple):
    """Largest tile <= preferred that is a multiple of `multiple` and divides
    `dim`; falls back to the full extent (always legal)."""
    if dim <= preferred or dim % multiple != 0:
        return dim
    t = (preferred // multiple) * multiple
    while t >= multiple:
        if dim % t == 0:
            return t
        t -= multiple
    return dim


@functools.partial(jax.jit, static_argnames=("tm", "th"))
def gpt2_mlp(x, w_fc, b_fc, w_proj, b_proj, *, tm=256, th=512):
    """x: [B, S, E]; w_fc: [H, E]; b_fc: [H]; w_proj: [E, H]; b_proj: [E].

    Weights are used untransposed (PyTorch nn.Linear layout)."""
    B, S, E = x.shape
    H = w_fc.shape[0]               # 4 * n_embd
    M = B * S

    x2 = x.reshape(M, E)
    bfc2 = b_fc.reshape(1, H)
    bproj2 = b_proj.reshape(1, E)

    TM = _choose_tile(M, tm, 8)     # sublane granularity on the row axis
    TH = _choose_tile(H, th, 128)   # lane granularity on the hidden axis

    grid = (pl.cdiv(M, TM), pl.cdiv(H, TH))

    itemsize = lambda a: jnp.dtype(a.dtype).itemsize
    cost = pl.CostEstimate(
        flops=4 * M * E * H,                       # two matmuls, 2 flops/MAC
        transcendentals=M * H,                     # erf per hidden activation
        bytes_accessed=(x2.size * itemsize(x2)
                        + w_fc.size * itemsize(w_fc)
                        + w_proj.size * itemsize(w_proj)
                        + b_fc.size * itemsize(b_fc)
                        + b_proj.size * itemsize(b_proj)
                        + M * E * itemsize(x2)))   # output

    out = pl.pallas_call(
        gpt2_mlp_kernel,
        out_shape=jax.ShapeDtypeStruct((M, E), x.dtype),
        grid_spec=pltpu.PrefetchScalarGridSpec(
            num_scalar_prefetch=0,
            grid=grid,
            in_specs=[
                pl.BlockSpec((TM, E), lambda i, k: (i, 0)),   # x tile (resident over k)
                pl.BlockSpec((TH, E), lambda i, k: (k, 0)),   # W_fc H-slice
                pl.BlockSpec((1, TH), lambda i, k: (0, k)),   # b_fc H-slice
                pl.BlockSpec((E, TH), lambda i, k: (0, k)),   # W_proj H-slice
                pl.BlockSpec((1, E), lambda i, k: (0, 0)),    # b_proj
            ],
            out_specs=pl.BlockSpec((TM, E), lambda i, k: (i, 0)),
            scratch_shapes=[pltpu.VMEM((TM, E), jnp.float32)],
        ),
        compiler_params=pltpu.CompilerParams(
            dimension_semantics=("parallel", "arbitrary")),
        cost_estimate=cost,
    )(x2, w_fc, bfc2, w_proj, bproj2)

    return out.reshape(B, S, E)


def _reference(x, w_fc, b_fc, w_proj, b_proj):
    h = jnp.einsum("bse,he->bsh", x, w_fc) + b_fc
    h = 0.5 * h * (1.0 + lax.erf(h / jnp.sqrt(2.0)))
    y = jnp.einsum("bsh,eh->bse", h, w_proj) + b_proj
    return y  # dropout identity (eval)


if __name__ == "__main__":
    # Config: n_embd=32, activation='gelu', eval mode.
    B, S, E = 2, 8, 32
    H = 4 * E

    key = jax.random.PRNGKey(0)
    kx, kw1, kb1, kw2, kb2 = jax.random.split(key, 5)

    x = jax.random.normal(kx, (B, S, E), dtype=jnp.float32)

    # nn.Linear default init: uniform +/- 1/sqrt(fan_in)
    bound1 = 1.0 / math.sqrt(E)
    w_fc = jax.random.uniform(kw1, (H, E), jnp.float32, -bound1, bound1)
    b_fc = jax.random.uniform(kb1, (H,), jnp.float32, -bound1, bound1)

    bound2 = 1.0 / math.sqrt(H)
    w_proj = jax.random.uniform(kw2, (E, H), jnp.float32, -bound2, bound2)
    b_proj = jax.random.uniform(kb2, (E,), jnp.float32, -bound2, bound2)

    # f32 path: bit-close to the PyTorch/f32 reference.
    y = gpt2_mlp(x, w_fc, b_fc, w_proj, b_proj)
    y = jax.block_until_ready(y)
    y_ref = _reference(x, w_fc, b_fc, w_proj, b_proj)
    assert y.shape == (B, S, E)
    assert jnp.allclose(y, y_ref, atol=1e-5, rtol=1e-5), "f32 mismatch vs reference"

    # bf16 path: native MXU bf16 x bf16 -> f32 accumulation (perf path).
    to_bf16 = lambda a: a.astype(jnp.bfloat16)
    y_bf = gpt2_mlp(to_bf16(x), to_bf16(w_fc), to_bf16(b_fc),
                    to_bf16(w_proj), to_bf16(b_proj))
    y_bf = jax.block_until_ready(y_bf)
    y_ref_bf = _reference(to_bf16(x).astype(jnp.float32),
                          to_bf16(w_fc).astype(jnp.float32),
                          to_bf16(b_fc).astype(jnp.float32),
                          to_bf16(w_proj).astype(jnp.float32),
                          to_bf16(b_proj).astype(jnp.float32))
    assert y_bf.dtype == jnp.bfloat16
    assert jnp.allclose(y_bf.astype(jnp.float32), y_ref_bf,
                        atol=3e-2, rtol=3e-2), "bf16 mismatch vs reference"

    print("KERNEL_OK")
</pallas_src>

<mosaic_0001>
module attributes {stable_mosaic.version = 11 : i64} {
  func.func @gpt2_mlp_kernel(%arg0: i32, %arg1: i32, %arg2: memref<16x32xf32, #tpu.memory_space<vmem>>, %arg3: memref<128x32xf32, #tpu.memory_space<vmem>>, %arg4: memref<1x128xf32, #tpu.memory_space<vmem>>, %arg5: memref<32x128xf32, #tpu.memory_space<vmem>>, %arg6: memref<1x32xf32, #tpu.memory_space<vmem>>, %arg7: memref<16x32xf32, #tpu.memory_space<vmem>>, %arg8: memref<16x32xf32, #tpu.memory_space<vmem>>) attributes {dimension_semantics = [#tpu.dimension_semantics<parallel>, #tpu.dimension_semantics<arbitrary>], iteration_bounds = array<i64: 1, 1>, scalar_prefetch = 0 : i64, scratch_operands = 1 : i64, tpu.core_type = #tpu.core_type<tc>, window_params = [{transform_indices = @transform_0, window_bounds = array<i64: 16, 32>}, {transform_indices = @transform_1, window_bounds = array<i64: 128, 32>}, {transform_indices = @transform_2, window_bounds = array<i64: 1, 128>}, {transform_indices = @transform_3, window_bounds = array<i64: 32, 128>}, {pipeline_mode = #tpu.pipeline_mode<synchronous>, transform_indices = @transform_4, window_bounds = array<i64: 1, 32>}, {transform_indices = @transform_5, window_bounds = array<i64: 16, 32>}]} {
    %c0_i32 = arith.constant 0 : i32
    %0 = arith.cmpi eq, %arg1, %c0_i32 : i32
    %1 = arith.extui %0 : i1 to i32
    %c0_i32_0 = arith.constant 0 : i32
    %2 = arith.cmpi ne, %1, %c0_i32_0 : i32
    scf.if %2 {
      %c0_18 = arith.constant 0 : index
      %c0_19 = arith.constant 0 : index
      %25 = vector.load %arg6[%c0_18, %c0_19] : memref<1x32xf32, #tpu.memory_space<vmem>>, vector<1x32xf32>
      %26 = vector.shape_cast %25 : vector<1x32xf32> to vector<1x32xf32>
      %27 = vector.broadcast %26 : vector<1x32xf32> to vector<16x32xf32>
      %c0_20 = arith.constant 0 : index
      %c0_21 = arith.constant 0 : index
      %28 = vector.load %arg8[%c0_20, %c0_21] : memref<16x32xf32, #tpu.memory_space<vmem>>, vector<16x32xf32>
      tpu.vector_store %arg8[%c0_20, %c0_21], %27 {strides = array<i32>} : memref<16x32xf32, #tpu.memory_space<vmem>>, vector<16x32xf32>,
    } else {
    }
    %c0 = arith.constant 0 : index
    %c0_1 = arith.constant 0 : index
    %3 = vector.load %arg2[%c0, %c0_1] : memref<16x32xf32, #tpu.memory_space<vmem>>, vector<16x32xf32>
    %c0_2 = arith.constant 0 : index
    %c0_3 = arith.constant 0 : index
    %4 = vector.load %arg3[%c0_2, %c0_3] : memref<128x32xf32, #tpu.memory_space<vmem>>, vector<128x32xf32>
    %cst = arith.constant dense<0.000000e+00> : vector<16x128xf32>
    %5 = tpu.matmul %3, %4, %cst {dimension_numbers = #tpu.dot_dimension_numbers<[1], [1], [0], [0], [0, 0, 1, 0], [], []>} : vector<16x32xf32>, vector<128x32xf32>, vector<16x128xf32> -> vector<16x128xf32>
    %c0_4 = arith.constant 0 : index
    %c0_5 = arith.constant 0 : index
    %6 = vector.load %arg4[%c0_4, %c0_5] : memref<1x128xf32, #tpu.memory_space<vmem>>, vector<1x128xf32>
    %7 = vector.broadcast %6 : vector<1x128xf32> to vector<16x128xf32>
    %8 = arith.addf %5, %7 : vector<16x128xf32>
    %cst_6 = arith.constant 5.000000e-01 : f32
    %9 = vector.broadcast %cst_6 : f32 to vector<16x128xf32>
    %10 = arith.mulf %9, %8 : vector<16x128xf32>
    %cst_7 = arith.constant 0.707106769 : f32
    %11 = vector.broadcast %cst_7 : f32 to vector<16x128xf32>
    %12 = arith.mulf %8, %11 : vector<16x128xf32>
    %13 = math.erf %12 : vector<16x128xf32>
    %cst_8 = arith.constant 1.000000e+00 : f32
    %14 = vector.broadcast %cst_8 : f32 to vector<16x128xf32>
    %15 = arith.addf %14, %13 : vector<16x128xf32>
    %16 = arith.mulf %10, %15 : vector<16x128xf32>
    %c0_9 = arith.constant 0 : index
    %c0_10 = arith.constant 0 : index
    %17 = vector.load %arg8[%c0_9, %c0_10] : memref<16x32xf32, #tpu.memory_space<vmem>>, vector<16x32xf32>
    %c0_11 = arith.constant 0 : index
    %c0_12 = arith.constant 0 : index
    %18 = vector.load %arg5[%c0_11, %c0_12] : memref<32x128xf32, #tpu.memory_space<vmem>>, vector<32x128xf32>
    %cst_13 = arith.constant dense<0.000000e+00> : vector<16x32xf32>
    %19 = tpu.matmul %16, %18, %cst_13 {dimension_numbers = #tpu.dot_dimension_numbers<[1], [1], [0], [0], [0, 0, 1, 0], [], []>} : vector<16x128xf32>, vector<32x128xf32>, vector<16x32xf32> -> vector<16x32xf32>
    %20 = arith.addf %17, %19 : vector<16x32xf32>
    %c0_14 = arith.constant 0 : index
    %c0_15 = arith.constant 0 : index
    %21 = vector.load %arg8[%c0_14, %c0_15] : memref<16x32xf32, #tpu.memory_space<vmem>>, vector<16x32xf32>
    tpu.vector_store %arg8[%c0_14, %c0_15], %20 {strides = array<i32>} : memref<16x32xf32, #tpu.memory_space<vmem>>, vector<16x32xf32>,
    %c0_i32_16 = arith.constant 0 : i32
    %22 = arith.cmpi eq, %arg1, %c0_i32_16 : i32
    %23 = arith.extui %22 : i1 to i32
    %c0_i32_17 = arith.constant 0 : i32
    %24 = arith.cmpi ne, %23, %c0_i32_17 : i32
    scf.if %24 {
      %c0_18 = arith.constant 0 : index
      %c0_19 = arith.constant 0 : index
      %25 = vector.load %arg8[%c0_18, %c0_19] : memref<16x32xf32, #tpu.memory_space<vmem>>, vector<16x32xf32>
      %c0_20 = arith.constant 0 : index
      %c0_21 = arith.constant 0 : index
      %26 = vector.load %arg7[%c0_20, %c0_21] : memref<16x32xf32, #tpu.memory_space<vmem>>, vector<16x32xf32>
      tpu.vector_store %arg7[%c0_20, %c0_21], %25 {strides = array<i32>} : memref<16x32xf32, #tpu.memory_space<vmem>>, vector<16x32xf32>,
    } else {
    }
    return
  }
  func.func @transform_0(%arg0: i32, %arg1: i32) -> (i32, i32) {
    %c0_i32 = arith.constant 0 : i32
    %c0_i32_0 = arith.constant 0 : i32
    return %arg0, %c0_i32 : i32, i32
  }
  func.func @transform_1(%arg0: i32, %arg1: i32) -> (i32, i32) {
    %c0_i32 = arith.constant 0 : i32
    %c0_i32_0 = arith.constant 0 : i32
    return %arg1, %c0_i32 : i32, i32
  }
  func.func @transform_2(%arg0: i32, %arg1: i32) -> (i32, i32) {
    %c0_i32 = arith.constant 0 : i32
    %c0_i32_0 = arith.constant 0 : i32
    return %c0_i32, %arg1 : i32, i32
  }
  func.func @transform_3(%arg0: i32, %arg1: i32) -> (i32, i32) {
    %c0_i32 = arith.constant 0 : i32
    %c0_i32_0 = arith.constant 0 : i32
    return %c0_i32, %arg1 : i32, i32
  }
  func.func @transform_4(%arg0: i32, %arg1: i32) -> (i32, i32) {
    %c0_i32 = arith.constant 0 : i32
    %c0_i32_0 = arith.constant 0 : i32
    %c0_i32_1 = arith.constant 0 : i32
    return %c0_i32, %c0_i32_0 : i32, i32
  }
  func.func @transform_5(%arg0: i32, %arg1: i32) -> (i32, i32) {
    %c0_i32 = arith.constant 0 : i32
    %c0_i32_0 = arith.constant 0 : i32
    return %arg0, %c0_i32 : i32, i32
  }
}

</mosaic_0001>

<llo_original>
// kernel: gpt2_mlp.1
$region0: #{gpt2_mlp.1}
  #allocation0 [shape = 'u32[]', space=smem, size = 0x4, offset = 0x4, fixed_abs, tag = 'smem constant byte address 0x4 - core index']
  #allocation1 [shape = 'u32[144,128]{1,0:T(1,128)}', space=vmem, size = 0x12000, scoped, tag = 'internal scratch']
  #allocation2 [shape = 'f32[16,32]{1,0:T(8,128)}', space=vmem, size = 0x2000, scoped, tag = 'scratch operand']
  %s0 = inlined_call_operand.vmem [shape: f32[16,32], index: 0, kind: input, shape index: {}]
  %s1 = inlined_call_operand.vmem [shape: f32[128,32], index: 1, kind: input, shape index: {}]
  %s2 = inlined_call_operand.vmem [shape: f32[1,128], index: 2, kind: input, shape index: {}]
  %s3 = inlined_call_operand.vmem [shape: f32[32,128], index: 3, kind: input, shape index: {}]
  %s4 = inlined_call_operand.vmem [shape: f32[1,32], index: 4, kind: input, shape index: {}]
  %s5 = inlined_call_operand.hbm [shape: f32[16,32], index: 5, kind: output, shape index: {}]
  %s6 = sld [smem:[#allocation0]]
  $region38: #{gpt2_mlp.1} parent=0
    _
  %s8 = ssub.s32 1, %s6
  %s9 = scalar_select 0, %s8, %s6
  $region1: #{gpt2_mlp.1} parent=0
    #allocation3 [shape = 'u8[8192]{0}', space=vmem, size = 0x2000, scoped, tag = 'output window, operand 0, single buffered']
    #allocation4 [shape = 's32[1]{0}', space=sflag, size = 0x4, scoped, tag = 'scoped memory for gpt2_mlp.1']
    %10 = vsyncpa [#allocation4], 0
    // Predicated region
    $region2: #{gpt2_mlp.1} parent=1 // pred_check
      _
    $region3: #{gpt2_mlp.1} parent=1 // pred_check_branch
      %12 = sbr.rel (0) target = $region5
    $region4: #{gpt2_mlp.1} parent=1 // pred_region
      _
    $region5: #{gpt2_mlp.1} parent=1 // pred_fallthru
      _
    // Predicated region
    $region6: #{gpt2_mlp.1} parent=1 // pred_check
      _
    $region7: #{gpt2_mlp.1} parent=1 // pred_check_branch
      %14 = sbr.rel (0) target = $region9
    $region8: #{gpt2_mlp.1} parent=1 // pred_region
      _
    $region9: #{gpt2_mlp.1} parent=1 // pred_fallthru
      _
    // Predicated region
    $region10: #{gpt2_mlp.1} parent=1 // pred_check
      _
    $region11: #{gpt2_mlp.1} parent=1 // pred_check_branch
      %16 = sbr.rel (0) target = $region13
    $region12: #{gpt2_mlp.1} parent=1 // pred_region
      _
    $region13: #{gpt2_mlp.1} parent=1 // pred_fallthru
      _
    // Predicated region
    $region14: #{gpt2_mlp.1} parent=1 // pred_check
      _
    $region15: #{gpt2_mlp.1} parent=1 // pred_check_branch
      %18 = sbr.rel (0) target = $region17
    $region16: #{gpt2_mlp.1} parent=1 // pred_region
      _
    $region17: #{gpt2_mlp.1} parent=1 // pred_fallthru
      _
    // Predicated region
    $region18: #{gpt2_mlp.1} parent=1 // pred_check
      _
    $region19: #{gpt2_mlp.1} parent=1 // pred_check_branch
      %20 = sbr.rel (0) target = $region21
    $region20: #{gpt2_mlp.1} parent=1 // pred_region
      _
    $region21: #{gpt2_mlp.1} parent=1 // pred_fallthru
      _
    %p21 = scmp.eq.s32.totalorder 0, 0
    // Predicated region
    $region22: #{gpt2_mlp.1} parent=1 // pred_check
      %p22 = pneg %p21
    $region23: #{gpt2_mlp.1} parent=1 // pred_check_branch
      %24 = sbr.rel (%p22) target = $region25
    $region24: #{gpt2_mlp.1} parent=1 // pred_region
      %v25 = vld [vmem:[%s4] sm:$0x1]
      %v27 = vlaneseq
      %v28 = vshrl.u32 %v27, 7
      %v29 = vsub.s32 0, %v28
      %v30 = vrot.slane %v25, %v29
      %vm32 = vcmask 261120
      %33 = vst.msk [vmem:[#allocation2] sm:$0xff] %vm32, %v30
      %34 = vst.msk [vmem:[#allocation2 + $0x8] sm:$0xff] %vm32, %v30
    $region25: #{gpt2_mlp.1} parent=1 // pred_fallthru
      _
    %v35 = vld [vmem:[%s0] sm:$0xff]
    %v36 = vld [vmem:[%s0 + $0x8] sm:$0xff]
    %v37 = vld [vmem:[%s1] sm:$0xff]
    %v38 = vld [vmem:[%s1 + $0x8] sm:$0xff]
    %v39 = vld [vmem:[%s1 + $0x10] sm:$0xff]
    %v40 = vld [vmem:[%s1 + $0x18] sm:$0xff]
    %v41 = vld [vmem:[%s1 + $0x20] sm:$0xff]
    %v42 = vld [vmem:[%s1 + $0x28] sm:$0xff]
    %v43 = vld [vmem:[%s1 + $0x30] sm:$0xff]
    %v44 = vld [vmem:[%s1 + $0x38] sm:$0xff]
    %v45 = vld [vmem:[%s1 + $0x40] sm:$0xff]
    %v46 = vld [vmem:[%s1 + $0x48] sm:$0xff]
    %v47 = vld [vmem:[%s1 + $0x50] sm:$0xff]
    %v48 = vld [vmem:[%s1 + $0x58] sm:$0xff]
    %v49 = vld [vmem:[%s1 + $0x60] sm:$0xff]
    %v50 = vld [vmem:[%s1 + $0x68] sm:$0xff]
    %v51 = vld [vmem:[%s1 + $0x70] sm:$0xff]
    %v52 = vld [vmem:[%s1 + $0x78] sm:$0xff]
    %v53 = vld [vmem:[%s2] sm:$0x1]
    %v55 = vlaneseq
    %v56 = vshrl.u32 %v55, 7
    %v57 = vsub.s32 0, %v56
    %v58 = vrot.slane %v53, %v57
    %vm60 = vcmask 261120
    %v62 = vsel %vm60, %v35, 0
    %v65 = vsel %vm60, %v36, 0
    %v68 = vsel %vm60, %v37, 0
    %v71 = vsel %vm60, %v38, 0
    %v74 = vsel %vm60, %v39, 0
    %v77 = vsel %vm60, %v40, 0
    %v80 = vsel %vm60, %v41, 0
    %v83 = vsel %vm60, %v42, 0
    %v86 = vsel %vm60, %v43, 0
    %v89 = vsel %vm60, %v44, 0
    %v92 = vsel %vm60, %v45, 0
    %v95 = vsel %vm60, %v46, 0
    %v98 = vsel %vm60, %v47, 0
    %v101 = vsel %vm60, %v48, 0
    %v104 = vsel %vm60, %v49, 0
    %v107 = vsel %vm60, %v50, 0
    %v110 = vsel %vm60, %v51, 0
    %v113 = vsel %vm60, %v52, 0
    %115 = vmatprep.subr.mxu0 0.0
    %116 = vmatpush1.xpose.msra.mxu0 %v113
    %117 = vmatprep.subr.mxu0 0.0
    %118 = vmatpush1.xpose.msra.mxu0 %v110
    %119 = vmatprep.subr.mxu0 0.0
    %120 = vmatpush1.xpose.msra.mxu0 %v107
    %121 = vmatprep.subr.mxu0 0.0
    %122 = vmatpush1.xpose.msra.mxu0 %v104
    %123 = vmatprep.subr.mxu0 0.0
    %124 = vmatpush1.xpose.msra.mxu0 %v101
    %125 = vmatprep.subr.mxu0 0.0
    %126 = vmatpush1.xpose.msra.mxu0 %v98
    %127 = vmatprep.subr.mxu0 0.0
    %128 = vmatpush1.xpose.msra.mxu0 %v95
    %129 = vmatprep.subr.mxu0 0.0
    %130 = vmatpush1.xpose.msra.mxu0 %v92
    %131 = vmatprep.subr.mxu0 0.0
    %132 = vmatpush1.xpose.msra.mxu0 %v89
    %133 = vmatprep.subr.mxu0 0.0
    %134 = vmatpush1.xpose.msra.mxu0 %v86
    %135 = vmatprep.subr.mxu0 0.0
    %136 = vmatpush1.xpose.msra.mxu0 %v83
    %137 = vmatprep.subr.mxu0 0.0
    %138 = vmatpush1.xpose.msra.mxu0 %v80
    %139 = vmatprep.subr.mxu0 0.0
    %140 = vmatpush1.xpose.msra.mxu0 %v77
    %141 = vmatprep.subr.mxu0 0.0
    %142 = vmatpush1.xpose.msra.mxu0 %v74
    %143 = vmatprep.subr.mxu0 0.0
    %144 = vmatpush1.xpose.msra.mxu0 %v71
    %145 = vmatprep.subr.mxu0 0.0
    %146 = vmatpush1.xpose.msra.mxu0 %v68
    %147 = vmatprep.subr.mxu0 0.0
    %148 = vmatpush2.xpose.msra.mxu0 0.0
    %149 = vmatprep.subr.mxu0 0.0
    %150 = vmatpush2.xpose.msra.mxu0 0.0
    %151 = vmatprep.subr.mxu0 0.0
    %152 = vmatpush2.xpose.msra.mxu0 0.0
    %153 = vmatprep.subr.mxu0 0.0
    %154 = vmatpush2.xpose.msra.mxu0 0.0
    %155 = vmatprep.subr.mxu0 0.0
    %156 = vmatpush2.xpose.msra.mxu0 0.0
    %157 = vmatprep.subr.mxu0 0.0
    %158 = vmatpush2.xpose.msra.mxu0 0.0
    %159 = vmatprep.subr.mxu0 0.0
    %160 = vmatpush2.xpose.msra.mxu0 0.0
    %161 = vmatprep.subr.mxu0 0.0
    %162 = vmatpush2.xpose.msra.mxu0 0.0
    %163 = vmatprep.subr.mxu0 0.0
    %164 = vmatpush2.xpose.msra.mxu0 0.0
    %165 = vmatprep.subr.mxu0 0.0
    %166 = vmatpush2.xpose.msra.mxu0 0.0
    %167 = vmatprep.subr.mxu0 0.0
    %168 = vmatpush2.xpose.msra.mxu0 0.0
    %169 = vmatprep.subr.mxu0 0.0
    %170 = vmatpush2.xpose.msra.mxu0 0.0
    %171 = vmatprep.subr.mxu0 0.0
    %172 = vmatpush2.xpose.msra.mxu0 0.0
    %173 = vmatprep.subr.mxu0 0.0
    %174 = vmatpush2.xpose.msra.mxu0 0.0
    %175 = vmatprep.subr.mxu0 0.0
    %176 = vmatpush2.xpose.msra.mxu0 0.0
    %177 = vmatprep.subr.mxu0 0.0
    %178 = vmatpush2.xpose.msra.mxu0 0.0
    %179 = vmatprep.mubr.f32.mxu0 0.0
    %180 = vmatmul.mubr.f32.gmra.mxu0 %v62
    %v181 = vpop.f32.mrf.mxu0
    %v182 = vadd.f32 %v58, %v181
    %v183 = vpop.f32.mrf.mxu0
    %184 = vmatprep.mubr.f32.mxu0 0.0
    %185 = vmatmul.mubr.f32.gmra.mxu0 %v65
    %v186 = vpop.f32.mrf.mxu0
    %v187 = vadd.f32 %v58, %v186
    %v188 = vpop.f32.mrf.mxu0
    %189 = vdwg.mxu0
    %v190 = vmul.f32 %v182, 0.5
    %v191 = vmul.f32 %v187, 0.5
    %v192 = vmul.f32 %v182, 0.70710677
    %v193 = vmul.f32 %v187, 0.70710677
    %v194 = verf.f32.pop %v192
    %v195 = verf.f32.pop %v193
    %v196 = vadd.f32 %v194, 1.0
    %v197 = vadd.f32 %v195, 1.0
    %v198 = vmul.f32 %v190, %v196
    %v199 = vmul.f32 %v191, %v197
    %v200 = vld [vmem:[#allocation2] sm:$0xff]
    %v201 = vld [vmem:[#allocation2 + $0x8] sm:$0xff]
    %v202 = vld [vmem:[%s3] sm:$0xff]
    %v203 = vld [vmem:[%s3 + $0x8] sm:$0xff]
    %v204 = vld [vmem:[%s3 + $0x10] sm:$0xff]
    %v205 = vld [vmem:[%s3 + $0x18] sm:$0xff]
    %206 = vmatprep.subr.mxu0 0.0
    %207 = vmatpush1.xpose.msra.mxu0 0.0
    %208 = vmatprep.subr.mxu0 0.0
    %209 = vmatpush1.xpose.msra.mxu0 0.0
    %210 = vmatprep.subr.mxu0 0.0
    %211 = vmatpush1.xpose.msra.mxu0 0.0
    %212 = vmatprep.subr.mxu0 0.0
    %213 = vmatpush1.xpose.msra.mxu0 0.0
    %214 = vmatprep.subr.mxu0 0.0
    %215 = vmatpush1.xpose.msra.mxu0 0.0
    %216 = vmatprep.subr.mxu0 0.0
    %217 = vmatpush1.xpose.msra.mxu0 0.0
    %218 = vmatprep.subr.mxu0 0.0
    %219 = vmatpush1.xpose.msra.mxu0 0.0
    %220 = vmatprep.subr.mxu0 0.0
    %221 = vmatpush1.xpose.msra.mxu0 0.0
    %222 = vmatprep.subr.mxu0 0.0
    %223 = vmatpush1.xpose.msra.mxu0 0.0
    %224 = vmatprep.subr.mxu0 0.0
    %225 = vmatpush1.xpose.msra.mxu0 0.0
    %226 = vmatprep.subr.mxu0 0.0
    %227 = vmatpush1.xpose.msra.mxu0 0.0
    %228 = vmatprep.subr.mxu0 0.0
    %229 = vmatpush1.xpose.msra.mxu0 0.0
    %230 = vmatprep.subr.mxu0 0.0
    %231 = vmatpush1.xpose.msra.mxu0 %v205
    %232 = vmatprep.subr.mxu0 0.0
    %233 = vmatpush1.xpose.msra.mxu0 %v204
    %234 = vmatprep.subr.mxu0 0.0
    %235 = vmatpush1.xpose.msra.mxu0 %v203
    %236 = vmatprep.subr.mxu0 0.0
    %237 = vmatpush1.xpose.msra.mxu0 %v202
    %238 = vmatprep.subr.mxu0 0.0
    %239 = vmatpush2.xpose.msra.mxu0 0.0
    %240 = vmatprep.subr.mxu0 0.0
    %241 = vmatpush2.xpose.msra.mxu0 0.0
    %242 = vmatprep.subr.mxu0 0.0
    %243 = vmatpush2.xpose.msra.mxu0 0.0
    %244 = vmatprep.subr.mxu0 0.0
    %245 = vmatpush2.xpose.msra.mxu0 0.0
    %246 = vmatprep.subr.mxu0 0.0
    %247 = vmatpush2.xpose.msra.mxu0 0.0
    %248 = vmatprep.subr.mxu0 0.0
    %249 = vmatpush2.xpose.msra.mxu0 0.0
    %250 = vmatprep.subr.mxu0 0.0
    %251 = vmatpush2.xpose.msra.mxu0 0.0
    %252 = vmatprep.subr.mxu0 0.0
    %253 = vmatpush2.xpose.msra.mxu0 0.0
    %254 = vmatprep.subr.mxu0 0.0
    %255 = vmatpush2.xpose.msra.mxu0 0.0
    %256 = vmatprep.subr.mxu0 0.0
    %257 = vmatpush2.xpose.msra.mxu0 0.0
    %258 = vmatprep.subr.mxu0 0.0
    %259 = vmatpush2.xpose.msra.mxu0 0.0
    %260 = vmatprep.subr.mxu0 0.0
    %261 = vmatpush2.xpose.msra.mxu0 0.0
    %262 = vmatprep.subr.mxu0 0.0
    %263 = vmatpush2.xpose.msra.mxu0 0.0
    %264 = vmatprep.subr.mxu0 0.0
    %265 = vmatpush2.xpose.msra.mxu0 0.0
    %266 = vmatprep.subr.mxu0 0.0
    %267 = vmatpush2.xpose.msra.mxu0 0.0
    %268 = vmatprep.subr.mxu0 0.0
    %269 = vmatpush2.xpose.msra.mxu0 0.0
    %270 = vmatprep.mubr.f32.mxu0 0.0
    %271 = vmatmul.mubr.f32.gmra.mxu0 %v198
    %v272 = vpop.f32.mrf.mxu0
    %v273 = vadd.f32 0.0, %v272
    %v274 = vpop.f32.mrf.mxu0
    %275 = vmatprep.mubr.f32.mxu0 0.0
    %276 = vmatmul.mubr.f32.gmra.mxu0 %v199
    %v277 = vpop.f32.mrf.mxu0
    %v278 = vadd.f32 0.0, %v277
    %v279 = vpop.f32.mrf.mxu0
    %280 = vdwg.mxu0
    %v281 = vadd.f32 %v200, %v273
    %v282 = vadd.f32 %v201, %v278
    %283 = vst.msk [vmem:[#allocation2] sm:$0xff] %vm60, %v281
    %284 = vst.msk [vmem:[#allocation2 + $0x8] sm:$0xff] %vm60, %v282
    // Predicated region
    $region26: #{gpt2_mlp.1} parent=1 // pred_check
      %p285 = pneg %p21
    $region27: #{gpt2_mlp.1} parent=1 // pred_check_branch
      %287 = sbr.rel (%p285) target = $region29
    $region28: #{gpt2_mlp.1} parent=1 // pred_region
      %v288 = vld [vmem:[#allocation2] sm:$0xff]
      %v289 = vld [vmem:[#allocation2 + $0x8] sm:$0xff]
      %290 = vst.msk [vmem:[#allocation3] sm:$0xff] %vm60, %v288
      %291 = vst.msk [vmem:[#allocation3 + $0x8] sm:$0xff] %vm60, %v289
    $region29: #{gpt2_mlp.1} parent=1 // pred_fallthru
      _
    // Predicated region
    $region30: #{gpt2_mlp.1} parent=1 // pred_check
      _
    $region31: #{gpt2_mlp.1} parent=1 // pred_check_branch
      %293 = sbr.rel (0) target = $region33
    $region32: #{gpt2_mlp.1} parent=1 // pred_region
      %s295 = ssub.s32 256, 256
      %296 = vsyncadd [#allocation4], %s295
      %s297 = sshll.u32 [#allocation3], 4
      %s298 = int_to_ptr.vmem [resolvable:$true] %s297
      %303 = dma.vmem_to_hbm [thread:$0]  %s298, 256, %s5, [#allocation4], 128, 128, 8
    $region33: #{gpt2_mlp.1} parent=1 // pred_fallthru
      _
    // Predicated region
    $region34: #{gpt2_mlp.1} parent=1 // pred_check
      _
    $region35: #{gpt2_mlp.1} parent=1 // pred_check_branch
      %305 = sbr.rel (0) target = $region37
    $region36: #{gpt2_mlp.1} parent=1 // pred_region
      %306 = dma.done [#allocation4], 256
    $region37: #{gpt2_mlp.1} parent=1 // pred_fallthru
      _
    %307 = vsyncpa [#allocation4], 1

</llo_original>
